<compile_context>
chip_gen: v7x
topology: tpu7x:2x2x1
jax: 0.10.0
libtpu: 0.0.40
codegen_flags: <defaults>
</compile_context>

<pallas_src>
import functools

import jax
import jax.numpy as jnp
from jax.experimental import pallas as pl
from jax.experimental.pallas import tpu as pltpu

_LANE_WIDTHS = (4096, 2048, 1024, 512, 256, 128)
_TARGET_TILE_BYTES = 4 * 1024 * 1024  # ~4 MiB input tile (mem-bound sweet spot)


def _mix32(v):
    """lowbias32 avalanche hash on uint32 vectors (pure VPU ops)."""
    v = v ^ (v >> jnp.uint32(16))
    v = v * jnp.uint32(0x7FEB352D)
    v = v ^ (v >> jnp.uint32(15))
    v = v * jnp.uint32(0x846CA68B)
    v = v ^ (v >> jnp.uint32(16))
    return v


def _dropout_kernel(seed_ref, x_ref, o_ref, *, p: float, tile_rows: int):
    rows_t, lanes = x_ref.shape
    i = pl.program_id(0)

    # Global element index of every element of this tile (wraps mod 2^32,
    # which only matters past 4G elements and is still a valid random stream).
    row_ids = jax.lax.broadcasted_iota(jnp.int32, (rows_t, lanes), 0)
    col_ids = jax.lax.broadcasted_iota(jnp.int32, (rows_t, lanes), 1)
    idx = (i * tile_rows + row_ids) * lanes + col_ids
    idx_u = idx.astype(jnp.uint32)

    # Counter-based RNG: hash(seed, global index) -> uniform uint32.
    seed_u = jnp.broadcast_to(seed_ref[0], (rows_t, lanes)).astype(jnp.uint32)
    key = seed_u * jnp.uint32(0x9E3779B9) + jnp.uint32(0x85EBCA6B)
    h = _mix32(idx_u ^ key)

    # Drop with probability p: pure integer compare, no float conversion.
    threshold = min(int(round(p * 4294967296.0)), 4294967295)
    keep = h >= jnp.uint32(threshold)

    scale = jnp.asarray(1.0 / (1.0 - p), dtype=x_ref.dtype)
    o_ref[...] = jnp.where(keep, x_ref[...] * scale, jnp.zeros((), dtype=o_ref.dtype))


def dropout_mc(x: jax.Array, p: float, *, training: bool, seed: int = 0) -> jax.Array:
    """Pallas implementation of DropoutMC.forward for an array of any shape."""
    if not training or p == 0.0:
        return x
    if p >= 1.0:
        return jnp.zeros_like(x)

    orig_shape = x.shape
    orig_dtype = x.dtype
    flat = x.reshape(-1)
    n = flat.shape[0]

    # Pad only when the flat size is not lane-aligned; in the common
    # multiple-of-128 case the reshape below is free (no extra HBM pass).
    if n % 128 == 0:
        n_pad = n
    else:
        n_pad = ((n + 1023) // 1024) * 1024
        flat = jnp.pad(flat, (0, n_pad - n))

    lanes = next(L for L in _LANE_WIDTHS if n_pad % L == 0)
    rows = n_pad // lanes
    x2d = flat.reshape(rows, lanes)

    # ~4 MiB tiles; tile rows a multiple of 8 (or the full row extent).
    itemsize = jnp.dtype(orig_dtype).itemsize
    target_rows = max(8, _TARGET_TILE_BYTES // (lanes * itemsize))
    target_rows = (target_rows // 8) * 8
    tile_rows = rows if rows <= target_rows else target_rows
    grid = (pl.cdiv(rows, tile_rows),)

    seed_arr = jnp.asarray([seed], dtype=jnp.int32)

    out2d = pl.pallas_call(
        functools.partial(_dropout_kernel, p=float(p), tile_rows=tile_rows),
        out_shape=jax.ShapeDtypeStruct((rows, lanes), orig_dtype),
        grid_spec=pltpu.PrefetchScalarGridSpec(
            num_scalar_prefetch=1,
            grid=grid,
            in_specs=[pl.BlockSpec((tile_rows, lanes), lambda i, seed: (i, 0))],
            out_specs=pl.BlockSpec((tile_rows, lanes), lambda i, seed: (i, 0)),
        ),
        compiler_params=pltpu.CompilerParams(
            dimension_semantics=("parallel",),
            vmem_limit_bytes=48 * 1024 * 1024,
        ),
    )(seed_arr, x2d)

    out_flat = out2d.reshape(-1)
    if n_pad != n:
        out_flat = out_flat[:n]
    return out_flat.reshape(orig_shape)


class DropoutMC:
    """Mirror of the PyTorch module (no learnable parameters)."""

    def __init__(self, p: float, activate: bool = False):
        self.p = p
        self.p_init = p
        self.activate = activate
        self.training = True  # torch modules default to training mode

    def __call__(self, x: jax.Array, seed: int = 0) -> jax.Array:
        # TODO(synk): PyTorch draws the mask from the global RNG state; here an
        # explicit integer seed selects the mask (deterministic per seed).
        return dropout_mc(x, self.p, training=(self.training or self.activate), seed=seed)


if __name__ == "__main__":
    key = jax.random.PRNGKey(0)
    # NCHW input, matching PyTorch convention.
    x = jax.random.normal(key, (2, 4, 16, 16), dtype=jnp.float32)

    module = DropoutMC(p=0.3, activate=True)
    y = jax.block_until_ready(module(x, seed=42))

    # Basic sanity checks on dropout semantics.
    assert y.shape == x.shape and y.dtype == x.dtype
    scale = 1.0 / (1.0 - module.p)
    kept = y != 0.0
    max_err = jnp.max(jnp.where(kept, jnp.abs(y - x * scale), 0.0))
    assert float(max_err) < 1e-5, float(max_err)
    drop_frac = 1.0 - float(jnp.mean(kept.astype(jnp.float32)))
    assert 0.1 < drop_frac < 0.5, drop_frac

    # Awkward (non-lane-aligned) shape exercises the padded path.
    x_odd = jax.random.normal(jax.random.PRNGKey(1), (3, 5, 7), dtype=jnp.float32)
    y_odd = jax.block_until_ready(dropout_mc(x_odd, 0.3, training=True, seed=7))
    kept_odd = y_odd != 0.0
    err_odd = jnp.max(jnp.where(kept_odd, jnp.abs(y_odd - x_odd * scale), 0.0))
    assert y_odd.shape == x_odd.shape and float(err_odd) < 1e-5

    # Inference mode (training=False, activate=False) is identity.
    module.training = False
    module.activate = False
    y_eval = jax.block_until_ready(module(x))
    assert bool(jnp.all(y_eval == x))

    print("KERNEL_OK")
</pallas_src>

<mosaic_0001>
module attributes {stable_mosaic.version = 11 : i64} {
  func.func @_dropout_kernel(%arg0: i32, %arg1: memref<1xi32, #tpu.memory_space<smem>>, %arg2: memref<1x2048xf32, #tpu.memory_space<vmem>>, %arg3: memref<1x2048xf32, #tpu.memory_space<vmem>>) attributes {dimension_semantics = [#tpu.dimension_semantics<parallel>], iteration_bounds = array<i64: 1>, scalar_prefetch = 1 : i64, scratch_operands = 0 : i64, tpu.core_type = #tpu.core_type<tc>, window_params = [{transform_indices = @transform_0, window_bounds = array<i64: 1, 2048>}, {transform_indices = @transform_1, window_bounds = array<i64: 1, 2048>}]} {
    %0 = tpu.iota {dimensions = array<i32: 0>} : vector<1x2048xi32>
    %1 = tpu.iota {dimensions = array<i32: 1>} : vector<1x2048xi32>
    %c1_i32 = arith.constant 1 : i32
    %2 = arith.muli %arg0, %c1_i32 : i32
    %3 = vector.broadcast %2 : i32 to vector<1x2048xi32>
    %4 = arith.addi %3, %0 : vector<1x2048xi32>
    %c2048_i32 = arith.constant 2048 : i32
    %5 = vector.broadcast %c2048_i32 : i32 to vector<1x2048xi32>
    %6 = arith.muli %4, %5 : vector<1x2048xi32>
    %7 = arith.addi %6, %1 : vector<1x2048xi32>
    %c0 = arith.constant 0 : index
    %8 = memref.load %arg1[%c0] : memref<1xi32, #tpu.memory_space<smem>>
    %9 = vector.broadcast %8 : i32 to vector<1x2048xi32>
    %c-1640531527_i32 = arith.constant -1640531527 : i32
    %10 = vector.broadcast %c-1640531527_i32 : i32 to vector<1x2048xi32>
    %11 = arith.muli %9, %10 : vector<1x2048xi32>
    %c-2048144789_i32 = arith.constant -2048144789 : i32
    %12 = vector.broadcast %c-2048144789_i32 : i32 to vector<1x2048xi32>
    %13 = arith.addi %11, %12 : vector<1x2048xi32>
    %14 = arith.xori %7, %13 : vector<1x2048xi32>
    %c16_i32 = arith.constant 16 : i32
    %15 = vector.broadcast %c16_i32 : i32 to vector<1x2048xi32>
    %16 = arith.shrui %14, %15 : vector<1x2048xi32>
    %17 = arith.xori %14, %16 : vector<1x2048xi32>
    %c2146121005_i32 = arith.constant 2146121005 : i32
    %18 = vector.broadcast %c2146121005_i32 : i32 to vector<1x2048xi32>
    %19 = arith.muli %17, %18 : vector<1x2048xi32>
    %c15_i32 = arith.constant 15 : i32
    %20 = vector.broadcast %c15_i32 : i32 to vector<1x2048xi32>
    %21 = arith.shrui %19, %20 : vector<1x2048xi32>
    %22 = arith.xori %19, %21 : vector<1x2048xi32>
    %c-2073254261_i32 = arith.constant -2073254261 : i32
    %23 = vector.broadcast %c-2073254261_i32 : i32 to vector<1x2048xi32>
    %24 = arith.muli %22, %23 : vector<1x2048xi32>
    %c16_i32_0 = arith.constant 16 : i32
    %25 = vector.broadcast %c16_i32_0 : i32 to vector<1x2048xi32>
    %26 = arith.shrui %24, %25 : vector<1x2048xi32>
    %27 = arith.xori %24, %26 : vector<1x2048xi32>
    %c1288490189_i32 = arith.constant 1288490189 : i32
    %28 = vector.broadcast %c1288490189_i32 : i32 to vector<1x2048xi32>
    %29 = arith.cmpi uge, %27, %28 : vector<1x2048xi32>
    %c0_1 = arith.constant 0 : index
    %c0_2 = arith.constant 0 : index
    %30 = vector.load %arg2[%c0_1, %c0_2] : memref<1x2048xf32, #tpu.memory_space<vmem>>, vector<1x2048xf32>
    %cst = arith.constant 1.42857146 : f32
    %31 = vector.broadcast %cst : f32 to vector<1x2048xf32>
    %32 = arith.mulf %30, %31 : vector<1x2048xf32>
    %cst_3 = arith.constant 0.000000e+00 : f32
    %33 = vector.broadcast %cst_3 : f32 to vector<1x2048xf32>
    %34 = arith.select %29, %32, %33 : vector<1x2048xi1>, vector<1x2048xf32>
    %c0_4 = arith.constant 0 : index
    %c0_5 = arith.constant 0 : index
    %35 = vector.load %arg3[%c0_4, %c0_5] : memref<1x2048xf32, #tpu.memory_space<vmem>>, vector<1x2048xf32>
    tpu.vector_store %arg3[%c0_4, %c0_5], %34 {strides = array<i32>} : memref<1x2048xf32, #tpu.memory_space<vmem>>, vector<1x2048xf32>,
    return
  }
  func.func @transform_0(%arg0: i32, %arg1: memref<1xi32, #tpu.memory_space<smem>>) -> (i32, i32) {
    %c0_i32 = arith.constant 0 : i32
    %c0_i32_0 = arith.constant 0 : i32
    return %arg0, %c0_i32 : i32, i32
  }
  func.func @transform_1(%arg0: i32, %arg1: memref<1xi32, #tpu.memory_space<smem>>) -> (i32, i32) {
    %c0_i32 = arith.constant 0 : i32
    %c0_i32_0 = arith.constant 0 : i32
    return %arg0, %c0_i32 : i32, i32
  }
}

</mosaic_0001>

<llo_original>
// kernel: tpu_custom_call.1
$region0: #{tpu_custom_call.1}
  #allocation0 [shape = 'u32[]', space=smem, size = 0x4, offset = 0x4, fixed_abs, tag = 'smem constant byte address 0x4 - core index']
  #allocation1 [shape = 'u32[144,128]{1,0:T(1,128)}', space=vmem, size = 0x12000, scoped, tag = 'internal scratch']
  #allocation2 [shape = 's32[1]{0}', space=sflag, size = 0x4, scoped, tag = 'scoped memory for tpu_custom_call.1']
  #allocation3 [shape = 's32[1]{0:T(128)S(6)}', space=smem, size = 0x200, scoped, tag = 'prefetched SMEM operand 0']
  %s0 = inlined_call_operand.<no memory space> [shape: s32[1], index: 0, kind: input, shape index: {}]
  %s1 = inlined_call_operand.hbm [shape: f32[1,2048], index: 1, kind: input, shape index: {}]
  %s2 = inlined_call_operand.hbm [shape: f32[1,2048], index: 2, kind: output, shape index: {}]
  %s3 = sld [smem:[#allocation0]]
  $region18: #{tpu_custom_call.1} parent=0
    _
  %s5 = ssub.s32 1, %s3
  %s6 = scalar_select 0, %s5, %s3
  %7 = sst [smem:[#allocation3]] %s0
  $region1: #{tpu_custom_call.1} parent=0
    #allocation4 [shape = 'u8[8192]{0}', space=vmem, size = 0x2000, scoped, tag = 'input window, operand 1, single buffered']
    #allocation5 [shape = 's32[1]{0}', space=sflag, size = 0x4, scoped, tag = 'scoped memory for tpu_custom_call.1']
    #allocation6 [shape = 's32[1]{0}', space=sflag, size = 0x4, scoped, tag = 'scoped memory for tpu_custom_call.1']
    #allocation7 [shape = 'u8[8192]{0}', space=vmem, size = 0x2000, scoped, tag = 'output window, operand 0, single buffered']
    %8 = vsyncpa [#allocation5], 0
    %9 = vsyncpa [#allocation6], 0
    // Predicated region
    $region2: #{tpu_custom_call.1} parent=1 // pred_check
      _
    $region3: #{tpu_custom_call.1} parent=1 // pred_check_branch
      %11 = sbr.rel (0) target = $region5
    $region4: #{tpu_custom_call.1} parent=1 // pred_region
      %s13 = ssub.s32 256, 256
      %14 = vsyncadd [#allocation5], %s13
      %s16 = sshll.u32 [#allocation4], 4
      %s17 = int_to_ptr.vmem [resolvable:$true] %s16
      %19 = dma.hbm_to_vmem [thread:$0]  %s1, 256, %s17, [#allocation5]
    $region5: #{tpu_custom_call.1} parent=1 // pred_fallthru
      _
    // Predicated region
    $region6: #{tpu_custom_call.1} parent=1 // pred_check
      _
    $region7: #{tpu_custom_call.1} parent=1 // pred_check_branch
      %21 = sbr.rel (0) target = $region9
    $region8: #{tpu_custom_call.1} parent=1 // pred_region
      %22 = dma.done [#allocation5], 256
    $region9: #{tpu_custom_call.1} parent=1 // pred_fallthru
      _
    %v23 = vlaneseq
    %v24 = vshrl.u32 %v23, 7
    %v25 = vlaneseq
    %v26 = vand.u32 %v25, 127
    %v27 = vadd.s32 %v26, 128
    %v28 = vadd.s32 %v26, 256
    %v29 = vadd.s32 %v26, 384
    %v30 = vadd.s32 %v26, 512
    %v31 = vadd.s32 %v26, 640
    %v32 = vadd.s32 %v26, 768
    %v33 = vadd.s32 %v26, 896
    %v34 = vadd.s32 %v26, 1024
    %v35 = vadd.s32 %v26, 1152
    %v36 = vadd.s32 %v26, 1280
    %v37 = vadd.s32 %v26, 1408
    %v38 = vadd.s32 %v26, 1536
    %v39 = vadd.s32 %v26, 1664
    %v40 = vadd.s32 %v26, 1792
    %v41 = vadd.s32 %v26, 1920
    %v42 = vstv 0
    %v43 = vadd.s32 %v42, %v24
    %v44 = vmul.u32 %v43, 2048
    %v45 = vadd.s32 %v44, %v26
    %v46 = vadd.s32 %v44, %v27
    %v47 = vadd.s32 %v44, %v28
    %v48 = vadd.s32 %v44, %v29
    %v49 = vadd.s32 %v44, %v30
    %v50 = vadd.s32 %v44, %v31
    %v51 = vadd.s32 %v44, %v32
    %v52 = vadd.s32 %v44, %v33
    %v53 = vadd.s32 %v44, %v34
    %v54 = vadd.s32 %v44, %v35
    %v55 = vadd.s32 %v44, %v36
    %v56 = vadd.s32 %v44, %v37
    %v57 = vadd.s32 %v44, %v38
    %v58 = vadd.s32 %v44, %v39
    %v59 = vadd.s32 %v44, %v40
    %v60 = vadd.s32 %v44, %v41
    %s61 = sld [smem:[#allocation3]]
    %v62 = vstv %s61
    %v63 = vmul.u32 %v62, 2654435769
    %v64 = vadd.s32 %v63, 2246822507
    %v65 = vxor.u32 %v45, %v64
    %v66 = vxor.u32 %v46, %v64
    %v67 = vxor.u32 %v47, %v64
    %v68 = vxor.u32 %v48, %v64
    %v69 = vxor.u32 %v49, %v64
    %v70 = vxor.u32 %v50, %v64
    %v71 = vxor.u32 %v51, %v64
    %v72 = vxor.u32 %v52, %v64
    %v73 = vxor.u32 %v53, %v64
    %v74 = vxor.u32 %v54, %v64
    %v75 = vxor.u32 %v55, %v64
    %v76 = vxor.u32 %v56, %v64
    %v77 = vxor.u32 %v57, %v64
    %v78 = vxor.u32 %v58, %v64
    %v79 = vxor.u32 %v59, %v64
    %v80 = vxor.u32 %v60, %v64
    %v81 = vshrl.u32 %v65, 16
    %v82 = vshrl.u32 %v66, 16
    %v83 = vshrl.u32 %v67, 16
    %v84 = vshrl.u32 %v68, 16
    %v85 = vshrl.u32 %v69, 16
    %v86 = vshrl.u32 %v70, 16
    %v87 = vshrl.u32 %v71, 16
    %v88 = vshrl.u32 %v72, 16
    %v89 = vshrl.u32 %v73, 16
    %v90 = vshrl.u32 %v74, 16
    %v91 = vshrl.u32 %v75, 16
    %v92 = vshrl.u32 %v76, 16
    %v93 = vshrl.u32 %v77, 16
    %v94 = vshrl.u32 %v78, 16
    %v95 = vshrl.u32 %v79, 16
    %v96 = vshrl.u32 %v80, 16
    %v97 = vxor.u32 %v65, %v81
    %v98 = vxor.u32 %v66, %v82
    %v99 = vxor.u32 %v67, %v83
    %v100 = vxor.u32 %v68, %v84
    %v101 = vxor.u32 %v69, %v85
    %v102 = vxor.u32 %v70, %v86
    %v103 = vxor.u32 %v71, %v87
    %v104 = vxor.u32 %v72, %v88
    %v105 = vxor.u32 %v73, %v89
    %v106 = vxor.u32 %v74, %v90
    %v107 = vxor.u32 %v75, %v91
    %v108 = vxor.u32 %v76, %v92
    %v109 = vxor.u32 %v77, %v93
    %v110 = vxor.u32 %v78, %v94
    %v111 = vxor.u32 %v79, %v95
    %v112 = vxor.u32 %v80, %v96
    %v113 = vmul.u32 %v97, 2146121005
    %v114 = vmul.u32 %v98, 2146121005
    %v115 = vmul.u32 %v99, 2146121005
    %v116 = vmul.u32 %v100, 2146121005
    %v117 = vmul.u32 %v101, 2146121005
    %v118 = vmul.u32 %v102, 2146121005
    %v119 = vmul.u32 %v103, 2146121005
    %v120 = vmul.u32 %v104, 2146121005
    %v121 = vmul.u32 %v105, 2146121005
    %v122 = vmul.u32 %v106, 2146121005
    %v123 = vmul.u32 %v107, 2146121005
    %v124 = vmul.u32 %v108, 2146121005
    %v125 = vmul.u32 %v109, 2146121005
    %v126 = vmul.u32 %v110, 2146121005
    %v127 = vmul.u32 %v111, 2146121005
    %v128 = vmul.u32 %v112, 2146121005
    %v129 = vshrl.u32 %v113, 15
    %v130 = vshrl.u32 %v114, 15
    %v131 = vshrl.u32 %v115, 15
    %v132 = vshrl.u32 %v116, 15
    %v133 = vshrl.u32 %v117, 15
    %v134 = vshrl.u32 %v118, 15
    %v135 = vshrl.u32 %v119, 15
    %v136 = vshrl.u32 %v120, 15
    %v137 = vshrl.u32 %v121, 15
    %v138 = vshrl.u32 %v122, 15
    %v139 = vshrl.u32 %v123, 15
    %v140 = vshrl.u32 %v124, 15
    %v141 = vshrl.u32 %v125, 15
    %v142 = vshrl.u32 %v126, 15
    %v143 = vshrl.u32 %v127, 15
    %v144 = vshrl.u32 %v128, 15
    %v145 = vxor.u32 %v113, %v129
    %v146 = vxor.u32 %v114, %v130
    %v147 = vxor.u32 %v115, %v131
    %v148 = vxor.u32 %v116, %v132
    %v149 = vxor.u32 %v117, %v133
    %v150 = vxor.u32 %v118, %v134
    %v151 = vxor.u32 %v119, %v135
    %v152 = vxor.u32 %v120, %v136
    %v153 = vxor.u32 %v121, %v137
    %v154 = vxor.u32 %v122, %v138
    %v155 = vxor.u32 %v123, %v139
    %v156 = vxor.u32 %v124, %v140
    %v157 = vxor.u32 %v125, %v141
    %v158 = vxor.u32 %v126, %v142
    %v159 = vxor.u32 %v127, %v143
    %v160 = vxor.u32 %v128, %v144
    %v161 = vmul.u32 %v145, 2221713035
    %v162 = vmul.u32 %v146, 2221713035
    %v163 = vmul.u32 %v147, 2221713035
    %v164 = vmul.u32 %v148, 2221713035
    %v165 = vmul.u32 %v149, 2221713035
    %v166 = vmul.u32 %v150, 2221713035
    %v167 = vmul.u32 %v151, 2221713035
    %v168 = vmul.u32 %v152, 2221713035
    %v169 = vmul.u32 %v153, 2221713035
    %v170 = vmul.u32 %v154, 2221713035
    %v171 = vmul.u32 %v155, 2221713035
    %v172 = vmul.u32 %v156, 2221713035
    %v173 = vmul.u32 %v157, 2221713035
    %v174 = vmul.u32 %v158, 2221713035
    %v175 = vmul.u32 %v159, 2221713035
    %v176 = vmul.u32 %v160, 2221713035
    %v177 = vshrl.u32 %v161, 16
    %v178 = vshrl.u32 %v162, 16
    %v179 = vshrl.u32 %v163, 16
    %v180 = vshrl.u32 %v164, 16
    %v181 = vshrl.u32 %v165, 16
    %v182 = vshrl.u32 %v166, 16
    %v183 = vshrl.u32 %v167, 16
    %v184 = vshrl.u32 %v168, 16
    %v185 = vshrl.u32 %v169, 16
    %v186 = vshrl.u32 %v170, 16
    %v187 = vshrl.u32 %v171, 16
    %v188 = vshrl.u32 %v172, 16
    %v189 = vshrl.u32 %v173, 16
    %v190 = vshrl.u32 %v174, 16
    %v191 = vshrl.u32 %v175, 16
    %v192 = vshrl.u32 %v176, 16
    %v193 = vxor.u32 %v161, %v177
    %v194 = vxor.u32 %v162, %v178
    %v195 = vxor.u32 %v163, %v179
    %v196 = vxor.u32 %v164, %v180
    %v197 = vxor.u32 %v165, %v181
    %v198 = vxor.u32 %v166, %v182
    %v199 = vxor.u32 %v167, %v183
    %v200 = vxor.u32 %v168, %v184
    %v201 = vxor.u32 %v169, %v185
    %v202 = vxor.u32 %v170, %v186
    %v203 = vxor.u32 %v171, %v187
    %v204 = vxor.u32 %v172, %v188
    %v205 = vxor.u32 %v173, %v189
    %v206 = vxor.u32 %v174, %v190
    %v207 = vxor.u32 %v175, %v191
    %v208 = vxor.u32 %v176, %v192
    %vm209 = vcmp.ge.u32.totalorder %v193, 1288490189
    %vm210 = vcmp.ge.u32.totalorder %v194, 1288490189
    %vm211 = vcmp.ge.u32.totalorder %v195, 1288490189
    %vm212 = vcmp.ge.u32.totalorder %v196, 1288490189
    %vm213 = vcmp.ge.u32.totalorder %v197, 1288490189
    %vm214 = vcmp.ge.u32.totalorder %v198, 1288490189
    %vm215 = vcmp.ge.u32.totalorder %v199, 1288490189
    %vm216 = vcmp.ge.u32.totalorder %v200, 1288490189
    %vm217 = vcmp.ge.u32.totalorder %v201, 1288490189
    %vm218 = vcmp.ge.u32.totalorder %v202, 1288490189
    %vm219 = vcmp.ge.u32.totalorder %v203, 1288490189
    %vm220 = vcmp.ge.u32.totalorder %v204, 1288490189
    %vm221 = vcmp.ge.u32.totalorder %v205, 1288490189
    %vm222 = vcmp.ge.u32.totalorder %v206, 1288490189
    %vm223 = vcmp.ge.u32.totalorder %v207, 1288490189
    %vm224 = vcmp.ge.u32.totalorder %v208, 1288490189
    %v225 = vld [vmem:[#allocation4] sm:$0xff]
    %v226 = vld [vmem:[#allocation4 + $0x8] sm:$0xff]
    %v227 = vmul.f32 %v225, 1.4285715
    %v228 = vmul.f32 %v226, 1.4285715
    %v231 = vlaneseq
    %v232 = vshrl.u32 %v231, 7
    %v233 = vsub.s32 0, %v232
    %v234 = vrot.slane %v227, %v233
    %v235 = vlaneseq
    %v236 = vshrl.u32 %v235, 7
    %v237 = vsub.s32 1, %v236
    %v238 = vrot.slane %v227, %v237
    %v239 = vlaneseq
    %v240 = vshrl.u32 %v239, 7
    %v241 = vsub.s32 2, %v240
    %v242 = vrot.slane %v227, %v241
    %v243 = vlaneseq
    %v244 = vshrl.u32 %v243, 7
    %v245 = vsub.s32 3, %v244
    %v246 = vrot.slane %v227, %v245
    %v247 = vlaneseq
    %v248 = vshrl.u32 %v247, 7
    %v249 = vsub.s32 4, %v248
    %v250 = vrot.slane %v227, %v249
    %v251 = vlaneseq
    %v252 = vshrl.u32 %v251, 7
    %v253 = vsub.s32 5, %v252
    %v254 = vrot.slane %v227, %v253
    %v255 = vlaneseq
    %v256 = vshrl.u32 %v255, 7
    %v257 = vsub.s32 6, %v256
    %v258 = vrot.slane %v227, %v257
    %v259 = vlaneseq
    %v260 = vshrl.u32 %v259, 7
    %v261 = vsub.s32 7, %v260
    %v262 = vrot.slane %v227, %v261
    %v263 = vlaneseq
    %v264 = vshrl.u32 %v263, 7
    %v265 = vsub.s32 0, %v264
    %v266 = vrot.slane %v228, %v265
    %v267 = vlaneseq
    %v268 = vshrl.u32 %v267, 7
    %v269 = vsub.s32 1, %v268
    %v270 = vrot.slane %v228, %v269
    %v271 = vlaneseq
    %v272 = vshrl.u32 %v271, 7
    %v273 = vsub.s32 2, %v272
    %v274 = vrot.slane %v228, %v273
    %v275 = vlaneseq
    %v276 = vshrl.u32 %v275, 7
    %v277 = vsub.s32 3, %v276
    %v278 = vrot.slane %v228, %v277
    %v279 = vlaneseq
    %v280 = vshrl.u32 %v279, 7
    %v281 = vsub.s32 4, %v280
    %v282 = vrot.slane %v228, %v281
    %v283 = vlaneseq
    %v284 = vshrl.u32 %v283, 7
    %v285 = vsub.s32 5, %v284
    %v286 = vrot.slane %v228, %v285
    %v287 = vlaneseq
    %v288 = vshrl.u32 %v287, 7
    %v289 = vsub.s32 6, %v288
    %v290 = vrot.slane %v228, %v289
    %v291 = vlaneseq
    %v292 = vshrl.u32 %v291, 7
    %v293 = vsub.s32 7, %v292
    %v294 = vrot.slane %v228, %v293
    %v311 = vsel %vm209, %v234, 0.0
    %v312 = vsel %vm210, %v238, 0.0
    %v313 = vsel %vm211, %v242, 0.0
    %v314 = vsel %vm212, %v246, 0.0
    %v315 = vsel %vm213, %v250, 0.0
    %v316 = vsel %vm214, %v254, 0.0
    %v317 = vsel %vm215, %v258, 0.0
    %v318 = vsel %vm216, %v262, 0.0
    %v319 = vsel %vm217, %v266, 0.0
    %v320 = vsel %vm218, %v270, 0.0
    %v321 = vsel %vm219, %v274, 0.0
    %v322 = vsel %vm220, %v278, 0.0
    %v323 = vsel %vm221, %v282, 0.0
    %v324 = vsel %vm222, %v286, 0.0
    %v325 = vsel %vm223, %v290, 0.0
    %v326 = vsel %vm224, %v294, 0.0
    %v343 = vcombine.low %v311, %v312
    %v344 = vcombine.low %v313, %v314
    %v345 = vcombine.low %v315, %v316
    %v346 = vcombine.low %v317, %v318
    %v348 = vunpack.c.l.s4 1966171168
    %v349 = vunpack.c.0.s8 %v348
    %v350 = vlaneseq
    %v351 = vshrl.u32 %v350, 7
    %v352 = vsub.s32 %v349, %v351
    %v353 = vrot.slane %v343, %v352
    %v355 = vunpack.c.l.s4 1966171168
    %v356 = vunpack.c.0.s8 %v355
    %v357 = vlaneseq
    %v358 = vshrl.u32 %v357, 7
    %v359 = vsub.s32 %v356, %v358
    %v360 = vrot.slane %v344, %v359
    %v362 = vunpack.c.l.s4 1966171168
    %v363 = vunpack.c.0.s8 %v362
    %v364 = vlaneseq
    %v365 = vshrl.u32 %v364, 7
    %v366 = vsub.s32 %v363, %v365
    %v367 = vrot.slane %v345, %v366
    %v369 = vunpack.c.l.s4 1966171168
    %v370 = vunpack.c.0.s8 %v369
    %v371 = vlaneseq
    %v372 = vshrl.u32 %v371, 7
    %v373 = vsub.s32 %v370, %v372
    %v374 = vrot.slane %v346, %v373
    %v375 = vcombine.low %v353, %v360
    %v376 = vcombine.low %v367, %v374
    %v378 = vunpack.c.l.s4 1966171168
    %v379 = vunpack.c.0.s8 %v378
    %v380 = vlaneseq
    %v381 = vshrl.u32 %v380, 7
    %v382 = vsub.s32 %v379, %v381
    %v383 = vrot.slane %v375, %v382
    %v385 = vunpack.c.l.s4 1966171168
    %v386 = vunpack.c.0.s8 %v385
    %v387 = vlaneseq
    %v388 = vshrl.u32 %v387, 7
    %v389 = vsub.s32 %v386, %v388
    %v390 = vrot.slane %v376, %v389
    %v391 = vcombine.low %v383, %v390
    %v392 = vcombine.low %v319, %v320
    %v393 = vcombine.low %v321, %v322
    %v394 = vcombine.low %v323, %v324
    %v395 = vcombine.low %v325, %v326
    %v397 = vunpack.c.l.s4 1966171168
    %v398 = vunpack.c.0.s8 %v397
    %v399 = vlaneseq
    %v400 = vshrl.u32 %v399, 7
    %v401 = vsub.s32 %v398, %v400
    %v402 = vrot.slane %v392, %v401
    %v404 = vunpack.c.l.s4 1966171168
    %v405 = vunpack.c.0.s8 %v404
    %v406 = vlaneseq
    %v407 = vshrl.u32 %v406, 7
    %v408 = vsub.s32 %v405, %v407
    %v409 = vrot.slane %v393, %v408
    %v411 = vunpack.c.l.s4 1966171168
    %v412 = vunpack.c.0.s8 %v411
    %v413 = vlaneseq
    %v414 = vshrl.u32 %v413, 7
    %v415 = vsub.s32 %v412, %v414
    %v416 = vrot.slane %v394, %v415
    %v418 = vunpack.c.l.s4 1966171168
    %v419 = vunpack.c.0.s8 %v418
    %v420 = vlaneseq
    %v421 = vshrl.u32 %v420, 7
    %v422 = vsub.s32 %v419, %v421
    %v423 = vrot.slane %v395, %v422
    %v424 = vcombine.low %v402, %v409
    %v425 = vcombine.low %v416, %v423
    %v427 = vunpack.c.l.s4 1966171168
    %v428 = vunpack.c.0.s8 %v427
    %v429 = vlaneseq
    %v430 = vshrl.u32 %v429, 7
    %v431 = vsub.s32 %v428, %v430
    %v432 = vrot.slane %v424, %v431
    %v434 = vunpack.c.l.s4 1966171168
    %v435 = vunpack.c.0.s8 %v434
    %v436 = vlaneseq
    %v437 = vshrl.u32 %v436, 7
    %v438 = vsub.s32 %v435, %v437
    %v439 = vrot.slane %v425, %v438
    %v440 = vcombine.low %v432, %v439
    %443 = vst [vmem:[#allocation7] sm:$0xff] %v391
    %444 = vst [vmem:[#allocation7 + $0x8] sm:$0xff] %v440
    // Predicated region
    $region10: #{tpu_custom_call.1} parent=1 // pred_check
      _
    $region11: #{tpu_custom_call.1} parent=1 // pred_check_branch
      %446 = sbr.rel (0) target = $region13
    $region12: #{tpu_custom_call.1} parent=1 // pred_region
      %s448 = ssub.s32 256, 256
      %449 = vsyncadd [#allocation6], %s448
      %s451 = sshll.u32 [#allocation7], 4
      %s452 = int_to_ptr.vmem [resolvable:$true] %s451
      %454 = dma.vmem_to_hbm [thread:$0]  %s452, 256, %s2, [#allocation6]
    $region13: #{tpu_custom_call.1} parent=1 // pred_fallthru
      _
    // Predicated region
    $region14: #{tpu_custom_call.1} parent=1 // pred_check
      _
    $region15: #{tpu_custom_call.1} parent=1 // pred_check_branch
      %456 = sbr.rel (0) target = $region17
    $region16: #{tpu_custom_call.1} parent=1 // pred_region
      %457 = dma.done [#allocation6], 256
    $region17: #{tpu_custom_call.1} parent=1 // pred_fallthru
      _
    %458 = vsyncpa [#allocation5], 1
    %459 = vsyncpa [#allocation6], 1

</llo_original>
